<compile_context>
chip_gen: v6e
topology: v6e:2x2x1
jax: 0.10.0
libtpu: 0.0.40
codegen_flags: <defaults>
</compile_context>

<pallas_src>
import jax
import jax.numpy as jnp
from jax import lax
from jax.experimental import pallas as pl
from jax.experimental.pallas import tpu as pltpu


def _dwconv_kernel(x_ref, top_ref, bot_ref, w_ref, b_ref, o_ref):
    # x_ref   : (1, TH, W, TC) current row tile of the unpadded input
    # top_ref : (1, 1,  W, TC) row just above the tile (clamped at the border)
    # bot_ref : (1, 1,  W, TC) row just below the tile (clamped at the border)
    # w_ref   : (3, 3, TC) depthwise filters;  b_ref: (1, TC) bias
    # o_ref   : (1, TH, W, TC) output tile
    TH, W, TC = x_ref.shape[1], x_ref.shape[2], x_ref.shape[3]
    rh = pl.program_id(2)
    last_rh = pl.num_programs(2) - 1

    f32 = jnp.float32
    x = x_ref[0].astype(f32)                                        # (TH, W, TC)
    # Halo rows: index_map clamps at the image border; zero the clamped row with
    # a scalar 0/1 multiply on the 1-row slab (cheap; == zero padding).
    top = top_ref[0].astype(f32) * (rh > 0).astype(f32)             # (1, W, TC)
    bot = bot_ref[0].astype(f32) * (rh < last_rh).astype(f32)       # (1, W, TC)

    w = w_ref[...].astype(f32)                                      # (3, 3, TC)
    b = b_ref[0].astype(f32)                                        # (TC,)

    # Vertical-first: row-slab concat (no lane/sublane movement).
    v = jnp.concatenate([top, x, bot], axis=0)                      # (TH+2, W, TC)
    v0 = v[0:TH]          # rows h-1
    v1 = v[1:TH + 1]      # rows h
    v2 = v[2:TH + 2]      # rows h+1

    # u_kw[h, j, c] = sum_kh w[kh, kw, c] * v[h + kh, j, c]
    u0 = w[0, 0] * v0 + w[1, 0] * v1 + w[2, 0] * v2
    u1 = w[0, 1] * v0 + w[1, 1] * v1 + w[2, 1] * v2
    u2 = w[0, 2] * v0 + w[1, 2] * v1 + w[2, 2] * v2

    # Horizontal taps: out[:, j] = u0[:, j-1] + u1[:, j] + u2[:, j+1]
    # Only 2 XLU rolls + 2 hoisted boundary-column masks.
    col = lax.broadcasted_iota(jnp.int32, (1, W, TC), 1)
    not_left = (col != 0).astype(f32)          # kill wrapped column of roll(+1)
    not_right = (col != W - 1).astype(f32)     # kill wrapped column of roll(-1)

    out = (not_left * pltpu.roll(u0, shift=1, axis=1)
           + u1
           + not_right * pltpu.roll(u2, shift=W - 1, axis=1)
           + b)

    o_ref[0] = out.astype(o_ref.dtype)


def _vmem_capacity_bytes():
    # Generation-aware: 128 MiB on v5e/v6e, 64 MiB per TC on v7x.
    try:
        info = pltpu.get_tpu_info()
        cap = getattr(info, "vmem_capacity_bytes", None)
        if cap:
            return int(cap)
    except Exception:
        pass
    return 64 * 1024 * 1024  # conservative fallback (v7x per-TC VMEM)


def _pick_tile_c(C):
    for tc in (256, 128):
        if C % tc == 0:
            return tc
    return C  # small-C fallback (lane-sparse but correct)


def _pick_tile_h(H, W, TC, itemsize, budget_bytes, max_th=None):
    """Largest divisor of H (<= max_th) whose estimated per-step VMEM footprint fits."""
    if max_th is None:
        max_th = H
    row_bytes_in = W * TC * itemsize
    best = 1
    for th in range(1, max_th + 1):
        if H % th:
            continue
        tile_in = th * row_bytes_in
        foot = (4 * tile_in                    # x + out blocks, double-buffered
                + 8 * row_bytes_in             # halo rows, double-buffered
                + 7 * th * W * TC * 4)         # in-kernel f32 temporaries (v, u0..u2, out)
        if foot <= budget_bytes:
            best = th
    return best


def dwconv_pallas(x_bnc, weight_33c, bias_c, H, W, *, tile_h=None, tile_c=None):
    """Depthwise 3x3 conv (stride 1, padding 1, bias).  x_bnc: (B, N, C), N == H*W."""
    B, N, C = x_bnc.shape
    assert N == H * W, "sequence length must equal H*W"
    itemsize = jnp.dtype(x_bnc.dtype).itemsize

    vmem_cap = _vmem_capacity_bytes()
    vmem_limit = int(vmem_cap * 0.75)          # headroom; never the full physical VMEM
    tile_budget = vmem_cap // 2

    TC = tile_c if tile_c is not None else _pick_tile_c(C)
    assert C % TC == 0, "tile_c must divide C"
    n_c = C // TC

    if tile_h is not None:
        TH = tile_h
        assert H % TH == 0, "tile_h must divide H"
    else:
        # Keep at least 2 grid steps so the 2 TensorCores on v7x both get work.
        max_th = H if (B * n_c) >= 2 else max(1, H // 2)
        TH = _pick_tile_h(H, W, TC, itemsize, tile_budget, max_th=max_th)
    n_rh = H // TH

    x = x_bnc.reshape(B, H, W, C)              # channel-last image; NO jnp.pad
    bias2d = bias_c.reshape(1, C)

    cost = pl.CostEstimate(
        flops=21 * B * H * W * C,
        transcendentals=0,
        bytes_accessed=(2 * B * H * W * C * itemsize            # read x, write out
                        + 2 * B * n_rh * W * C * itemsize       # halo re-reads
                        + 10 * B * C * 4),                      # weights + bias
    )

    # Grid: rows innermost so weight/bias block indices are constant over the
    # inner loop (no re-DMA) and x/out DMAs walk rows of one channel tile.
    def x_map(b, c, rh):                       # main TH-row tile (block units)
        return (b, rh, 0, c)

    def top_map(b, c, rh):                     # single row above the tile (row units)
        return (b, jnp.maximum(rh * TH - 1, 0), 0, c)

    def bot_map(b, c, rh):                     # single row below the tile (row units)
        return (b, jnp.minimum(rh * TH + TH, H - 1), 0, c)

    out = pl.pallas_call(
        _dwconv_kernel,
        out_shape=jax.ShapeDtypeStruct((B, H, W, C), x_bnc.dtype),
        grid_spec=pltpu.PrefetchScalarGridSpec(
            num_scalar_prefetch=0,
            grid=(B, n_c, n_rh),
            in_specs=[
                pl.BlockSpec((1, TH, W, TC), x_map),
                pl.BlockSpec((1, 1, W, TC), top_map),
                pl.BlockSpec((1, 1, W, TC), bot_map),
                pl.BlockSpec((3, 3, TC), lambda b, c, rh: (0, 0, c)),
                pl.BlockSpec((1, TC), lambda b, c, rh: (0, c)),
            ],
            out_specs=pl.BlockSpec((1, TH, W, TC), x_map),
        ),
        compiler_params=pltpu.CompilerParams(
            dimension_semantics=("parallel", "parallel", "parallel"),
            vmem_limit_bytes=vmem_limit,
        ),
        cost_estimate=cost,
    )(x, x, x, weight_33c, bias2d)

    return out.reshape(B, N, C)


def _reference_dwconv(x_bnc, weight_33c, bias_c, H, W):
    """Pure-JAX reference matching nn.Conv2d(dim, dim, 3, 1, 1, groups=dim)."""
    B, N, C = x_bnc.shape
    x = x_bnc.reshape(B, H, W, C)
    w = weight_33c.reshape(3, 3, 1, C)
    y = lax.conv_general_dilated(
        x, w, window_strides=(1, 1), padding=((1, 1), (1, 1)),
        dimension_numbers=("NHWC", "HWIO", "NHWC"),
        feature_group_count=C)
    y = y + bias_c.reshape(1, 1, 1, C)
    return y.reshape(B, N, C)


if __name__ == "__main__":
    key = jax.random.PRNGKey(0)
    k1, k2 = jax.random.split(key)

    # Config 1: module-sized small test (dim=C=4, 16x16 image). tile_h=8 forces
    # two row tiles so the halo/boundary paths are exercised.
    B, C, H, W = 2, 4, 16, 16
    N = H * W
    kx, kw, kb = jax.random.split(k1, 3)
    x = jax.random.normal(kx, (B, N, C), dtype=jnp.float32)
    weight = jax.random.normal(kw, (3, 3, C), dtype=jnp.float32) * 0.1  # torch (C,1,3,3)->(3,3,C)
    bias = jax.random.normal(kb, (C,), dtype=jnp.float32) * 0.1

    ref = _reference_dwconv(x, weight, bias, H, W)

    out = dwconv_pallas(x, weight, bias, H, W, tile_h=8)
    out = jax.block_until_ready(out)
    assert out.shape == (B, N, C)
    assert jnp.allclose(out, ref, atol=1e-5, rtol=1e-5)

    # Same shapes through the auto tile-size heuristic path.
    out_auto = dwconv_pallas(x, weight, bias, H, W)
    out_auto = jax.block_until_ready(out_auto)
    assert jnp.allclose(out_auto, ref, atol=1e-5, rtol=1e-5)

    # Config 2: lane-dense channel tiling path (C=256 -> two 128-channel tiles,
    # two row tiles).
    B2, C2, H2, W2 = 1, 256, 8, 8
    N2 = H2 * W2
    kx2, kw2, kb2 = jax.random.split(k2, 3)
    x2 = jax.random.normal(kx2, (B2, N2, C2), dtype=jnp.float32)
    weight2 = jax.random.normal(kw2, (3, 3, C2), dtype=jnp.float32) * 0.1
    bias2 = jax.random.normal(kb2, (C2,), dtype=jnp.float32) * 0.1

    out2 = dwconv_pallas(x2, weight2, bias2, H2, W2, tile_h=4, tile_c=128)
    out2 = jax.block_until_ready(out2)
    ref2 = _reference_dwconv(x2, weight2, bias2, H2, W2)
    assert jnp.allclose(out2, ref2, atol=1e-5, rtol=1e-5)

    print("KERNEL_OK")
</pallas_src>

<mosaic_0001>
module attributes {stable_mosaic.version = 11 : i64} {
  func.func @_dwconv_kernel(%arg0: i32, %arg1: i32, %arg2: i32, %arg3: memref<1x8x16x4xf32, #tpu.memory_space<vmem>>, %arg4: memref<1x1x16x4xf32, #tpu.memory_space<vmem>>, %arg5: memref<1x1x16x4xf32, #tpu.memory_space<vmem>>, %arg6: memref<3x3x4xf32, #tpu.memory_space<vmem>>, %arg7: memref<1x4xf32, #tpu.memory_space<vmem>>, %arg8: memref<1x8x16x4xf32, #tpu.memory_space<vmem>>) attributes {dimension_semantics = [#tpu.dimension_semantics<parallel>, #tpu.dimension_semantics<parallel>, #tpu.dimension_semantics<parallel>], iteration_bounds = array<i64: 2, 1, 2>, scalar_prefetch = 0 : i64, scratch_operands = 0 : i64, tpu.core_type = #tpu.core_type<tc>, window_params = [{transform_indices = @transform_0, window_bounds = array<i64: 1, 8, 16, 4>}, {transform_indices = @transform_1, window_bounds = array<i64: 1, 1, 16, 4>}, {transform_indices = @transform_2, window_bounds = array<i64: 1, 1, 16, 4>}, {transform_indices = @transform_3, window_bounds = array<i64: 3, 3, 4>}, {transform_indices = @transform_4, window_bounds = array<i64: 1, 4>}, {transform_indices = @transform_5, window_bounds = array<i64: 1, 8, 16, 4>}]} {
    %c0 = arith.constant 0 : index
    %c0_0 = arith.constant 0 : index
    %c0_1 = arith.constant 0 : index
    %c0_2 = arith.constant 0 : index
    %0 = vector.load %arg3[%c0, %c0_0, %c0_1, %c0_2] : memref<1x8x16x4xf32, #tpu.memory_space<vmem>>, vector<1x8x16x4xf32>
    %1 = vector.shape_cast %0 : vector<1x8x16x4xf32> to vector<8x16x4xf32>
    %c0_3 = arith.constant 0 : index
    %c0_4 = arith.constant 0 : index
    %c0_5 = arith.constant 0 : index
    %c0_6 = arith.constant 0 : index
    %2 = vector.load %arg4[%c0_3, %c0_4, %c0_5, %c0_6] : memref<1x1x16x4xf32, #tpu.memory_space<vmem>>, vector<1x1x16x4xf32>
    %3 = vector.shape_cast %2 : vector<1x1x16x4xf32> to vector<1x16x4xf32>
    %c0_i32 = arith.constant 0 : i32
    %4 = arith.cmpi sgt, %arg2, %c0_i32 : i32
    %5 = arith.extui %4 : i1 to i32
    %6 = arith.sitofp %5 : i32 to f32
    %7 = vector.broadcast %6 : f32 to vector<1x16x4xf32>
    %8 = arith.mulf %3, %7 : vector<1x16x4xf32>
    %c0_7 = arith.constant 0 : index
    %c0_8 = arith.constant 0 : index
    %c0_9 = arith.constant 0 : index
    %c0_10 = arith.constant 0 : index
    %9 = vector.load %arg5[%c0_7, %c0_8, %c0_9, %c0_10] : memref<1x1x16x4xf32, #tpu.memory_space<vmem>>, vector<1x1x16x4xf32>
    %10 = vector.shape_cast %9 : vector<1x1x16x4xf32> to vector<1x16x4xf32>
    %c1_i32 = arith.constant 1 : i32
    %11 = arith.cmpi slt, %arg2, %c1_i32 : i32
    %12 = arith.extui %11 : i1 to i32
    %13 = arith.sitofp %12 : i32 to f32
    %14 = vector.broadcast %13 : f32 to vector<1x16x4xf32>
    %15 = arith.mulf %10, %14 : vector<1x16x4xf32>
    %c0_11 = arith.constant 0 : index
    %c0_12 = arith.constant 0 : index
    %c0_13 = arith.constant 0 : index
    %16 = vector.load %arg6[%c0_11, %c0_12, %c0_13] : memref<3x3x4xf32, #tpu.memory_space<vmem>>, vector<3x3x4xf32>
    %c0_14 = arith.constant 0 : index
    %c0_15 = arith.constant 0 : index
    %17 = vector.load %arg7[%c0_14, %c0_15] : memref<1x4xf32, #tpu.memory_space<vmem>>, vector<1x4xf32>
    %18 = vector.shape_cast %17 : vector<1x4xf32> to vector<4xf32>
    %19 = tpu.concatenate %8, %1, %15 in 0 : vector<1x16x4xf32>, vector<8x16x4xf32>, vector<1x16x4xf32> -> vector<10x16x4xf32>
    %20 = vector.extract_strided_slice %19 {offsets = [0, 0, 0], sizes = [8, 16, 4], strides = [1, 1, 1]} : vector<10x16x4xf32> to vector<8x16x4xf32>
    %21 = vector.extract_strided_slice %19 {offsets = [1, 0, 0], sizes = [8, 16, 4], strides = [1, 1, 1]} : vector<10x16x4xf32> to vector<8x16x4xf32>
    %22 = vector.extract_strided_slice %19 {offsets = [2, 0, 0], sizes = [8, 16, 4], strides = [1, 1, 1]} : vector<10x16x4xf32> to vector<8x16x4xf32>
    %23 = vector.extract_strided_slice %16 {offsets = [0, 0, 0], sizes = [1, 1, 4], strides = [1, 1, 1]} : vector<3x3x4xf32> to vector<1x1x4xf32>
    %24 = vector.shape_cast %23 : vector<1x1x4xf32> to vector<4xf32>
    %25 = vector.shape_cast %24 : vector<4xf32> to vector<1x1x4xf32>
    %26 = vector.broadcast %25 : vector<1x1x4xf32> to vector<8x16x4xf32>
    %27 = arith.mulf %26, %20 : vector<8x16x4xf32>
    %28 = vector.extract_strided_slice %16 {offsets = [1, 0, 0], sizes = [1, 1, 4], strides = [1, 1, 1]} : vector<3x3x4xf32> to vector<1x1x4xf32>
    %29 = vector.shape_cast %28 : vector<1x1x4xf32> to vector<4xf32>
    %30 = vector.shape_cast %29 : vector<4xf32> to vector<1x1x4xf32>
    %31 = vector.broadcast %30 : vector<1x1x4xf32> to vector<8x16x4xf32>
    %32 = arith.mulf %31, %21 : vector<8x16x4xf32>
    %33 = arith.addf %27, %32 : vector<8x16x4xf32>
    %34 = vector.extract_strided_slice %16 {offsets = [2, 0, 0], sizes = [1, 1, 4], strides = [1, 1, 1]} : vector<3x3x4xf32> to vector<1x1x4xf32>
    %35 = vector.shape_cast %34 : vector<1x1x4xf32> to vector<4xf32>
    %36 = vector.shape_cast %35 : vector<4xf32> to vector<1x1x4xf32>
    %37 = vector.broadcast %36 : vector<1x1x4xf32> to vector<8x16x4xf32>
    %38 = arith.mulf %37, %22 : vector<8x16x4xf32>
    %39 = arith.addf %33, %38 : vector<8x16x4xf32>
    %40 = vector.extract_strided_slice %16 {offsets = [0, 1, 0], sizes = [1, 1, 4], strides = [1, 1, 1]} : vector<3x3x4xf32> to vector<1x1x4xf32>
    %41 = vector.shape_cast %40 : vector<1x1x4xf32> to vector<4xf32>
    %42 = vector.shape_cast %41 : vector<4xf32> to vector<1x1x4xf32>
    %43 = vector.broadcast %42 : vector<1x1x4xf32> to vector<8x16x4xf32>
    %44 = arith.mulf %43, %20 : vector<8x16x4xf32>
    %45 = vector.extract_strided_slice %16 {offsets = [1, 1, 0], sizes = [1, 1, 4], strides = [1, 1, 1]} : vector<3x3x4xf32> to vector<1x1x4xf32>
    %46 = vector.shape_cast %45 : vector<1x1x4xf32> to vector<4xf32>
    %47 = vector.shape_cast %46 : vector<4xf32> to vector<1x1x4xf32>
    %48 = vector.broadcast %47 : vector<1x1x4xf32> to vector<8x16x4xf32>
    %49 = arith.mulf %48, %21 : vector<8x16x4xf32>
    %50 = arith.addf %44, %49 : vector<8x16x4xf32>
    %51 = vector.extract_strided_slice %16 {offsets = [2, 1, 0], sizes = [1, 1, 4], strides = [1, 1, 1]} : vector<3x3x4xf32> to vector<1x1x4xf32>
    %52 = vector.shape_cast %51 : vector<1x1x4xf32> to vector<4xf32>
    %53 = vector.shape_cast %52 : vector<4xf32> to vector<1x1x4xf32>
    %54 = vector.broadcast %53 : vector<1x1x4xf32> to vector<8x16x4xf32>
    %55 = arith.mulf %54, %22 : vector<8x16x4xf32>
    %56 = arith.addf %50, %55 : vector<8x16x4xf32>
    %57 = vector.extract_strided_slice %16 {offsets = [0, 2, 0], sizes = [1, 1, 4], strides = [1, 1, 1]} : vector<3x3x4xf32> to vector<1x1x4xf32>
    %58 = vector.shape_cast %57 : vector<1x1x4xf32> to vector<4xf32>
    %59 = vector.shape_cast %58 : vector<4xf32> to vector<1x1x4xf32>
    %60 = vector.broadcast %59 : vector<1x1x4xf32> to vector<8x16x4xf32>
    %61 = arith.mulf %60, %20 : vector<8x16x4xf32>
    %62 = vector.extract_strided_slice %16 {offsets = [1, 2, 0], sizes = [1, 1, 4], strides = [1, 1, 1]} : vector<3x3x4xf32> to vector<1x1x4xf32>
    %63 = vector.shape_cast %62 : vector<1x1x4xf32> to vector<4xf32>
    %64 = vector.shape_cast %63 : vector<4xf32> to vector<1x1x4xf32>
    %65 = vector.broadcast %64 : vector<1x1x4xf32> to vector<8x16x4xf32>
    %66 = arith.mulf %65, %21 : vector<8x16x4xf32>
    %67 = arith.addf %61, %66 : vector<8x16x4xf32>
    %68 = vector.extract_strided_slice %16 {offsets = [2, 2, 0], sizes = [1, 1, 4], strides = [1, 1, 1]} : vector<3x3x4xf32> to vector<1x1x4xf32>
    %69 = vector.shape_cast %68 : vector<1x1x4xf32> to vector<4xf32>
    %70 = vector.shape_cast %69 : vector<4xf32> to vector<1x1x4xf32>
    %71 = vector.broadcast %70 : vector<1x1x4xf32> to vector<8x16x4xf32>
    %72 = arith.mulf %71, %22 : vector<8x16x4xf32>
    %73 = arith.addf %67, %72 : vector<8x16x4xf32>
    %74 = tpu.iota {dimensions = array<i32: 1>} : vector<1x16x4xi32>
    %c0_i32_16 = arith.constant 0 : i32
    %75 = vector.broadcast %c0_i32_16 : i32 to vector<1x16x4xi32>
    %76 = arith.cmpi ne, %74, %75 : vector<1x16x4xi32>
    %77 = arith.extui %76 : vector<1x16x4xi1> to vector<1x16x4xi32>
    %78 = arith.sitofp %77 : vector<1x16x4xi32> to vector<1x16x4xf32>
    %c15_i32 = arith.constant 15 : i32
    %79 = vector.broadcast %c15_i32 : i32 to vector<1x16x4xi32>
    %80 = arith.cmpi ne, %74, %79 : vector<1x16x4xi32>
    %81 = arith.extui %80 : vector<1x16x4xi1> to vector<1x16x4xi32>
    %82 = arith.sitofp %81 : vector<1x16x4xi32> to vector<1x16x4xf32>
    %c1_i32_17 = arith.constant 1 : i32
    %83 = tpu.dynamic_rotate %39 by %c1_i32_17 dim 1 : vector<8x16x4xf32>, i32 -> vector<8x16x4xf32>
    %84 = vector.broadcast %78 : vector<1x16x4xf32> to vector<8x16x4xf32>
    %85 = arith.mulf %84, %83 : vector<8x16x4xf32>
    %86 = arith.addf %85, %56 : vector<8x16x4xf32>
    %c15_i32_18 = arith.constant 15 : i32
    %87 = tpu.dynamic_rotate %73 by %c15_i32_18 dim 1 : vector<8x16x4xf32>, i32 -> vector<8x16x4xf32>
    %88 = vector.broadcast %82 : vector<1x16x4xf32> to vector<8x16x4xf32>
    %89 = arith.mulf %88, %87 : vector<8x16x4xf32>
    %90 = arith.addf %86, %89 : vector<8x16x4xf32>
    %91 = vector.shape_cast %18 : vector<4xf32> to vector<1x1x4xf32>
    %92 = vector.broadcast %91 : vector<1x1x4xf32> to vector<8x16x4xf32>
    %93 = arith.addf %90, %92 : vector<8x16x4xf32>
    %c0_19 = arith.constant 0 : index
    %c0_20 = arith.constant 0 : index
    %c0_21 = arith.constant 0 : index
    %c0_22 = arith.constant 0 : index
    %94 = vector.load %arg8[%c0_19, %c0_20, %c0_21, %c0_22] : memref<1x8x16x4xf32, #tpu.memory_space<vmem>>, vector<1x8x16x4xf32>
    %95 = vector.shape_cast %94 : vector<1x8x16x4xf32> to vector<8x16x4xf32>
    %96 = vector.shape_cast %93 : vector<8x16x4xf32> to vector<1x8x16x4xf32>
    tpu.vector_store %arg8[%c0_19, %c0_20, %c0_21, %c0_22], %96 {strides = array<i32>} : memref<1x8x16x4xf32, #tpu.memory_space<vmem>>, vector<1x8x16x4xf32>,
    return
  }
  func.func @transform_0(%arg0: i32, %arg1: i32, %arg2: i32) -> (i32, i32, i32, i32) {
    %c0_i32 = arith.constant 0 : i32
    %c0_i32_0 = arith.constant 0 : i32
    return %arg0, %arg2, %c0_i32, %arg1 : i32, i32, i32, i32
  }
  func.func @transform_1(%arg0: i32, %arg1: i32, %arg2: i32) -> (i32, i32, i32, i32) {
    %c8_i32 = arith.constant 8 : i32
    %0 = arith.muli %arg2, %c8_i32 : i32
    %c1_i32 = arith.constant 1 : i32
    %1 = arith.subi %0, %c1_i32 : i32
    %c0_i32 = arith.constant 0 : i32
    %2 = arith.maxsi %1, %c0_i32 : i32
    %c0_i32_0 = arith.constant 0 : i32
    %c0_i32_1 = arith.constant 0 : i32
    return %arg0, %2, %c0_i32_0, %arg1 : i32, i32, i32, i32
  }
  func.func @transform_2(%arg0: i32, %arg1: i32, %arg2: i32) -> (i32, i32, i32, i32) {
    %c8_i32 = arith.constant 8 : i32
    %0 = arith.muli %arg2, %c8_i32 : i32
    %c8_i32_0 = arith.constant 8 : i32
    %1 = arith.addi %0, %c8_i32_0 : i32
    %c15_i32 = arith.constant 15 : i32
    %2 = arith.minsi %1, %c15_i32 : i32
    %c0_i32 = arith.constant 0 : i32
    %c0_i32_1 = arith.constant 0 : i32
    return %arg0, %2, %c0_i32, %arg1 : i32, i32, i32, i32
  }
  func.func @transform_3(%arg0: i32, %arg1: i32, %arg2: i32) -> (i32, i32, i32) {
    %c0_i32 = arith.constant 0 : i32
    %c0_i32_0 = arith.constant 0 : i32
    %c0_i32_1 = arith.constant 0 : i32
    return %c0_i32, %c0_i32_0, %arg1 : i32, i32, i32
  }
  func.func @transform_4(%arg0: i32, %arg1: i32, %arg2: i32) -> (i32, i32) {
    %c0_i32 = arith.constant 0 : i32
    %c0_i32_0 = arith.constant 0 : i32
    return %c0_i32, %arg1 : i32, i32
  }
  func.func @transform_5(%arg0: i32, %arg1: i32, %arg2: i32) -> (i32, i32, i32, i32) {
    %c0_i32 = arith.constant 0 : i32
    %c0_i32_0 = arith.constant 0 : i32
    return %arg0, %arg2, %c0_i32, %arg1 : i32, i32, i32, i32
  }
}

</mosaic_0001>

<llo_original>
// kernel: tpu_custom_call.1
$region0: #{tpu_custom_call.1}
  #allocation0 [shape = 'u32[]', space=smem, size = 0x4, offset = 0x4, fixed_abs, tag = 'smem constant byte address 0x4 - core index']
  #allocation1 [shape = 'u32[144,128]{1,0:T(1,128)}', space=vmem, size = 0x12000, scoped, tag = 'internal scratch']
  %s0 = inlined_call_operand.vmem [shape: f32[2,16,16,4], index: 0, kind: input, shape index: {}]
  %s1 = inlined_call_operand.vmem [shape: f32[2,16,16,4], index: 1, kind: input, shape index: {}]
  %s2 = inlined_call_operand.vmem [shape: f32[2,16,16,4], index: 2, kind: input, shape index: {}]
  %s3 = inlined_call_operand.vmem [shape: f32[3,3,4], index: 3, kind: input, shape index: {}]
  %s4 = inlined_call_operand.vmem [shape: f32[1,4], index: 4, kind: input, shape index: {}]
  %s5 = inlined_call_operand.vmem [shape: f32[2,16,16,4], index: 5, kind: output, shape index: {}]
  %s6 = sld [smem:[#allocation0]]
  $region53: #{tpu_custom_call.1} parent=0
    _
  %s8 = ssub.s32 1, %s6
  %s9 = scalar_select 0, %s8, %s6
  loop: start=0, step=1, limit=6
  $region2: #{tpu_custom_call.1} parent=0 // loop_pre_header
    _
  $region3: #{tpu_custom_call.1} parent=0 // loop_header
    %s11 = sphi 0, %s15
    %p12 = scmp.ge.s32.totalorder %s11, 6
    %s18 = sphi 0, %s37
    %s19 = sphi 0, %s33
    %s20 = sphi 0, %s29
    %s21 = sphi 0, %s18
    %s22 = sphi 0, %s19
    %s23 = sphi 0, %s20
    %s24 = sphi 0, %s21
    %s25 = sphi 0, %s22
    %s26 = sphi 0, %s23
    %s44 = sphi 0, %s46
    %s47 = sphi 0, %s44
    %s48 = sphi 0, %s47
    %s64 = sphi 0, %s48
    %s82 = sphi 0, %s84
    %s85 = sphi 0, %s82
    %s86 = sphi 0, %s85
    %s102 = sphi 0, %s86
    %s120 = sphi 0, %s122
    %s123 = sphi 0, %s120
    %s124 = sphi 0, %s123
    %s140 = sphi 0, %s124
    %s146 = sphi 0, %s148
    %s149 = sphi 0, %s146
    %s150 = sphi 0, %s149
    %s166 = sphi 0, %s150
    %s172 = sphi 0, %s174
    %s175 = sphi 0, %s172
    %s176 = sphi 0, %s175
    %s192 = sphi 0, %s176
    %s202 = sphi 0, %s204
    %s205 = sphi 0, %s202
    %s206 = sphi 0, %s205
    %s222 = sphi 0, %s206
  $region4: #{tpu_custom_call.1} parent=0 // loop_header_branch
    %14 = sbr.rel (%p12) target = $region8
  $region5: #{tpu_custom_call.1} parent=0 // loop_body
    %s16 = ssub.s32 %s11, 1
    %s17 = ssub.s32 %s11, 2
    %s27 = sadd.s32 1, %s20
    %p28 = scmp.ge.s32.totalorder %s27, 2
    %s29 = scalar_select %p28, 0, %s27
    %s30 = sadd.s32 1, %s19
    %s31 = scalar_select %p28, %s30, %s19
    %p32 = scmp.ge.s32.totalorder %s31, 1
    %s33 = scalar_select %p32, 0, %s31
    %s34 = sadd.s32 1, %s18
    %s35 = scalar_select %p32, %s34, %s18
    %p36 = scmp.ge.s32.totalorder %s35, 2
    %s37 = scalar_select %p36, 0, %s35
    %s38 = ssub.s32 %s18, %s37
    %s39 = ssub.s32 %s20, %s29
    %s40 = sor.u32 %s38, %s39
    %s41 = ssub.s32 %s19, %s33
    %s42 = sor.u32 %s40, %s41
    %p43 = scmp.eq.s32.totalorder %s42, 0
    %s45 = sadd.s32 %s44, 1
    %s46 = scalar_select %p43, %s44, %s45
    %p49 = pneg %p43
    %p50 = scmp.eq.s32.totalorder %s11, 3
    %p51 = por %p49, %p50
    %p52 = scmp.ne.s32.totalorder %s44, %s47
    %p53 = scmp.eq.s32.totalorder %s11, 0
    %p54 = por %p52, %p53
    %p55 = scmp.ne.s32.totalorder %s44, %s47
    %p56 = scmp.eq.s32.totalorder %s16, 3
    %p57 = por %p55, %p56
    %p58 = scmp.ne.s32.totalorder %s47, %s48
    %p59 = scmp.eq.s32.totalorder %s16, 0
    %p60 = por %p58, %p59
    %p61 = scmp.ne.s32.totalorder %s47, %s48
    %p62 = scmp.eq.s32.totalorder %s17, 3
    %p63 = por %p61, %p62
    %p65 = scmp.ne.s32.totalorder %s48, %s64
    %p66 = scmp.eq.s32.totalorder %s17, 0
    %p67 = por %p65, %p66
    %s68 = smul.u32 %s20, 8
    %s69 = ssub.s32 %s68, 1
    %p70 = scmp.gt.s32.totalorder %s69, 0
    %s71 = scalar_select %p70, %s69, 0
    %s72 = smul.u32 %s29, 8
    %s73 = ssub.s32 %s72, 1
    %p74 = scmp.gt.s32.totalorder %s73, 0
    %s75 = scalar_select %p74, %s73, 0
    %s76 = ssub.s32 %s18, %s37
    %s77 = ssub.s32 %s71, %s75
    %s78 = sor.u32 %s76, %s77
    %s79 = ssub.s32 %s19, %s33
    %s80 = sor.u32 %s78, %s79
    %p81 = scmp.eq.s32.totalorder %s80, 0
    %s83 = sadd.s32 %s82, 1
    %s84 = scalar_select %p81, %s82, %s83
    %p87 = pneg %p81
    %p88 = scmp.eq.s32.totalorder %s11, 3
    %p89 = por %p87, %p88
    %p90 = scmp.ne.s32.totalorder %s82, %s85
    %p91 = scmp.eq.s32.totalorder %s11, 0
    %p92 = por %p90, %p91
    %p93 = scmp.ne.s32.totalorder %s82, %s85
    %p94 = scmp.eq.s32.totalorder %s16, 3
    %p95 = por %p93, %p94
    %p96 = scmp.ne.s32.totalorder %s85, %s86
    %p97 = scmp.eq.s32.totalorder %s16, 0
    %p98 = por %p96, %p97
    %p99 = scmp.ne.s32.totalorder %s85, %s86
    %p100 = scmp.eq.s32.totalorder %s17, 3
    %p101 = por %p99, %p100
    %p103 = scmp.ne.s32.totalorder %s86, %s102
    %p104 = scmp.eq.s32.totalorder %s17, 0
    %p105 = por %p103, %p104
    %s106 = smul.u32 %s20, 8
    %s107 = sadd.s32 %s106, 8
    %p108 = scmp.lt.s32.totalorder %s107, 15
    %s109 = scalar_select %p108, %s107, 15
    %s110 = smul.u32 %s29, 8
    %s111 = sadd.s32 %s110, 8
    %p112 = scmp.lt.s32.totalorder %s111, 15
    %s113 = scalar_select %p112, %s111, 15
    %s114 = ssub.s32 %s18, %s37
    %s115 = ssub.s32 %s109, %s113
    %s116 = sor.u32 %s114, %s115
    %s117 = ssub.s32 %s19, %s33
    %s118 = sor.u32 %s116, %s117
    %p119 = scmp.eq.s32.totalorder %s118, 0
    %s121 = sadd.s32 %s120, 1
    %s122 = scalar_select %p119, %s120, %s121
    %p125 = pneg %p119
    %p126 = scmp.eq.s32.totalorder %s11, 3
    %p127 = por %p125, %p126
    %p128 = scmp.ne.s32.totalorder %s120, %s123
    %p129 = scmp.eq.s32.totalorder %s11, 0
    %p130 = por %p128, %p129
    %p131 = scmp.ne.s32.totalorder %s120, %s123
    %p132 = scmp.eq.s32.totalorder %s16, 3
    %p133 = por %p131, %p132
    %p134 = scmp.ne.s32.totalorder %s123, %s124
    %p135 = scmp.eq.s32.totalorder %s16, 0
    %p136 = por %p134, %p135
    %p137 = scmp.ne.s32.totalorder %s123, %s124
    %p138 = scmp.eq.s32.totalorder %s17, 3
    %p139 = por %p137, %p138
    %p141 = scmp.ne.s32.totalorder %s124, %s140
    %p142 = scmp.eq.s32.totalorder %s17, 0
    %p143 = por %p141, %p142
    %s144 = ssub.s32 %s19, %s33
    %p145 = scmp.eq.s32.totalorder %s144, 0
    %s147 = sadd.s32 %s146, 1
    %s148 = scalar_select %p145, %s146, %s147
    %p151 = pneg %p145
    %p152 = scmp.eq.s32.totalorder %s11, 3
    %p153 = por %p151, %p152
    %p154 = scmp.ne.s32.totalorder %s146, %s149
    %p155 = scmp.eq.s32.totalorder %s11, 0
    %p156 = por %p154, %p155
    %p157 = scmp.ne.s32.totalorder %s146, %s149
    %p158 = scmp.eq.s32.totalorder %s16, 3
    %p159 = por %p157, %p158
    %p160 = scmp.ne.s32.totalorder %s149, %s150
    %p161 = scmp.eq.s32.totalorder %s16, 0
    %p162 = por %p160, %p161
    %p163 = scmp.ne.s32.totalorder %s149, %s150
    %p164 = scmp.eq.s32.totalorder %s17, 3
    %p165 = por %p163, %p164
    %p167 = scmp.ne.s32.totalorder %s150, %s166
    %p168 = scmp.eq.s32.totalorder %s17, 0
    %p169 = por %p167, %p168
    %s170 = ssub.s32 %s19, %s33
    %p171 = scmp.eq.s32.totalorder %s170, 0
    %s173 = sadd.s32 %s172, 1
    %s174 = scalar_select %p171, %s172, %s173
    %p177 = pneg %p171
    %p178 = scmp.eq.s32.totalorder %s11, 3
    %p179 = por %p177, %p178
    %p180 = scmp.ne.s32.totalorder %s172, %s175
    %p181 = scmp.eq.s32.totalorder %s11, 0
    %p182 = por %p180, %p181
    %p183 = scmp.ne.s32.totalorder %s172, %s175
    %p184 = scmp.eq.s32.totalorder %s16, 3
    %p185 = por %p183, %p184
    %p186 = scmp.ne.s32.totalorder %s175, %s176
    %p187 = scmp.eq.s32.totalorder %s16, 0
    %p188 = por %p186, %p187
    %p189 = scmp.ne.s32.totalorder %s175, %s176
    %p190 = scmp.eq.s32.totalorder %s17, 3
    %p191 = por %p189, %p190
    %p193 = scmp.ne.s32.totalorder %s176, %s192
    %p194 = scmp.eq.s32.totalorder %s17, 0
    %p195 = por %p193, %p194
    %s196 = ssub.s32 %s18, %s37
    %s197 = ssub.s32 %s20, %s29
    %s198 = sor.u32 %s196, %s197
    %s199 = ssub.s32 %s19, %s33
    %s200 = sor.u32 %s198, %s199
    %p201 = scmp.eq.s32.totalorder %s200, 0
    %s203 = sadd.s32 %s202, 1
    %s204 = scalar_select %p201, %s202, %s203
    %p207 = pneg %p201
    %p208 = scmp.eq.s32.totalorder %s11, 3
    %p209 = por %p207, %p208
    %p210 = scmp.ne.s32.totalorder %s202, %s205
    %p211 = scmp.eq.s32.totalorder %s11, 0
    %p212 = por %p210, %p211
    %p213 = scmp.ne.s32.totalorder %s202, %s205
    %p214 = scmp.eq.s32.totalorder %s16, 3
    %p215 = por %p213, %p214
    %p216 = scmp.ne.s32.totalorder %s205, %s206
    %p217 = scmp.eq.s32.totalorder %s16, 0
    %p218 = por %p216, %p217
    %p219 = scmp.ne.s32.totalorder %s205, %s206
    %p220 = scmp.eq.s32.totalorder %s17, 3
    %p221 = por %p219, %p220
    %p223 = scmp.ne.s32.totalorder %s206, %s222
    %p224 = scmp.eq.s32.totalorder %s17, 0
    %p225 = por %p223, %p224
    %p226 = scmp.le.s32.totalorder 1, %s11
    %p227 = scmp.lt.s32.totalorder %s11, 5
    %p228 = pnand %p226, %p227
    %p229 = pneg %p228
    // Predicated region
    $region9: #{tpu_custom_call.1} parent=5 // pred_check
      _
    $region10: #{tpu_custom_call.1} parent=5 // pred_check_branch
      %231 = sbr.rel (%p228) target = $region12
    $region11: #{tpu_custom_call.1} parent=5 // pred_region
      %s232 = ssub.s32 %s11, 1
      // Predicated region
      $region13: #{tpu_custom_call.1} parent=11 // pred_check
        %p233 = pneg %p162
      $region14: #{tpu_custom_call.1} parent=11 // pred_check_branch
        %235 = sbr.rel (%p233) target = $region16
      $region15: #{tpu_custom_call.1} parent=11 // pred_region
        %p236 = scmp.lt.s32.totalorder %s22, 0
        %s237 = scalar_select %p236, %s22, 0
        %s238 = smul.addr %s237, 4
        %s239 = scalar_lea.vmem %s3, %s238
      $region16: #{tpu_custom_call.1} parent=11 // pred_fallthru
        _
      // Predicated region
      $region17: #{tpu_custom_call.1} parent=11 // pred_check
        %p240 = pneg %p188
      $region18: #{tpu_custom_call.1} parent=11 // pred_check_branch
        %242 = sbr.rel (%p240) target = $region20
      $region19: #{tpu_custom_call.1} parent=11 // pred_region
        %p243 = scmp.lt.s32.totalorder %s22, 0
        %s244 = scalar_select %p243, %s22, 0
        %s245 = scalar_lea.vmem %s4, %s244
      $region20: #{tpu_custom_call.1} parent=11 // pred_fallthru
        _
    $region12: #{tpu_custom_call.1} parent=5 // pred_fallthru
      _
    %p246 = scmp.lt.s32.totalorder %s11, 4
    // Predicated region
    $region21: #{tpu_custom_call.1} parent=5 // pred_check
      %p247 = pneg %p246
    $region22: #{tpu_custom_call.1} parent=5 // pred_check_branch
      %249 = sbr.rel (%p247) target = $region24
    $region23: #{tpu_custom_call.1} parent=5 // pred_region
      // Predicated region
      $region25: #{tpu_custom_call.1} parent=23 // pred_check
        %p250 = pneg %p54
      $region26: #{tpu_custom_call.1} parent=23 // pred_check_branch
        %252 = sbr.rel (%p250) target = $region28
      $region27: #{tpu_custom_call.1} parent=23 // pred_region
        %s253 = smul.u32 8, %s20
        %p254 = scmp.lt.s32.totalorder %s18, 1
        %s255 = scalar_select %p254, %s18, 1
        %p256 = scmp.lt.s32.totalorder %s253, 15
        %s257 = scalar_select %p256, %s253, 15
        %p258 = scmp.lt.s32.totalorder %s19, 0
        %s259 = scalar_select %p258, %s19, 0
        %s260 = smul.addr %s257, 2
        %s261 = sadd.s32 %s259, %s260
        %s262 = smul.addr %s255, 32
        %s263 = sadd.s32 %s261, %s262
        %s264 = smul.addr %s263, 8
        %s265 = scalar_lea.vmem %s0, %s264
        %s266 = smul.u32 8, %s20
      $region28: #{tpu_custom_call.1} parent=23 // pred_fallthru
        _
      // Predicated region
      $region29: #{tpu_custom_call.1} parent=23 // pred_check
        %p267 = pneg %p92
      $region30: #{tpu_custom_call.1} parent=23 // pred_check_branch
        %269 = sbr.rel (%p267) target = $region32
      $region31: #{tpu_custom_call.1} parent=23 // pred_region
        %s270 = smul.u32 %s20, 8
        %s271 = ssub.s32 %s270, 1
        %p272 = scmp.gt.s32.totalorder %s271, 0
        %s273 = scalar_select %p272, %s271, 0
        %p274 = scmp.lt.s32.totalorder %s18, 1
        %s275 = scalar_select %p274, %s18, 1
        %p276 = scmp.lt.s32.totalorder %s273, 15
        %s277 = scalar_select %p276, %s273, 15
        %p278 = scmp.lt.s32.totalorder %s19, 0
        %s279 = scalar_select %p278, %s19, 0
        %s280 = smul.addr %s277, 2
        %s281 = sadd.s32 %s279, %s280
        %s282 = smul.addr %s275, 32
        %s283 = sadd.s32 %s281, %s282
        %s284 = smul.addr %s283, 8
        %s285 = scalar_lea.vmem %s1, %s284
        %s286 = smul.u32 %s20, 8
        %s287 = ssub.s32 %s286, 1
        %p288 = scmp.gt.s32.totalorder %s287, 0
        %s289 = scalar_select %p288, %s287, 0
      $region32: #{tpu_custom_call.1} parent=23 // pred_fallthru
        _
      // Predicated region
      $region33: #{tpu_custom_call.1} parent=23 // pred_check
        %p290 = pneg %p130
      $region34: #{tpu_custom_call.1} parent=23 // pred_check_branch
        %292 = sbr.rel (%p290) target = $region36
      $region35: #{tpu_custom_call.1} parent=23 // pred_region
        %s293 = smul.u32 %s20, 8
        %s294 = sadd.s32 %s293, 8
        %p295 = scmp.lt.s32.totalorder %s294, 15
        %s296 = scalar_select %p295, %s294, 15
        %p297 = scmp.lt.s32.totalorder %s18, 1
        %s298 = scalar_select %p297, %s18, 1
        %p299 = scmp.lt.s32.totalorder %s296, 15
        %s300 = scalar_select %p299, %s296, 15
        %p301 = scmp.lt.s32.totalorder %s19, 0
        %s302 = scalar_select %p301, %s19, 0
        %s303 = smul.addr %s300, 2
        %s304 = sadd.s32 %s302, %s303
        %s305 = smul.addr %s298, 32
        %s306 = sadd.s32 %s304, %s305
        %s307 = smul.addr %s306, 8
        %s308 = scalar_lea.vmem %s2, %s307
        %s309 = smul.u32 %s20, 8
        %s310 = sadd.s32 %s309, 8
        %p311 = scmp.lt.s32.totalorder %s310, 15
        %s312 = scalar_select %p311, %s310, 15
      $region36: #{tpu_custom_call.1} parent=23 // pred_fallthru
        _
    $region24: #{tpu_custom_call.1} parent=5 // pred_fallthru
      _
    %p313 = scmp.le.s32.totalorder 1, %s11
    %p314 = scmp.lt.s32.totalorder %s11, 5
    %p315 = pnand %p313, %p314
    %p316 = pneg %p315
    // Predicated region
    $region37: #{tpu_custom_call.1} parent=5 // pred_check
      _
    $region38: #{tpu_custom_call.1} parent=5 // pred_check_branch
      %318 = sbr.rel (%p315) target = $region40
    $region39: #{tpu_custom_call.1} parent=5 // pred_region
      %s319 = ssub.s32 %s11, 1
      %s320 = smul.u32 8, %s23
      %p321 = scmp.lt.s32.totalorder %s21, 1
      %s322 = scalar_select %p321, %s21, 1
      %p323 = scmp.lt.s32.totalorder %s320, 15
      %s324 = scalar_select %p323, %s320, 15
      %p325 = scmp.lt.s32.totalorder %s22, 0
      %s326 = scalar_select %p325, %s22, 0
      %s327 = smul.addr %s324, 2
      %s328 = sadd.s32 %s326, %s327
      %s329 = smul.addr %s322, 32
      %s330 = sadd.s32 %s328, %s329
      %s331 = smul.addr %s330, 8
      %s332 = scalar_lea.vmem %s0, %s331
      %p333 = pneg %p60
      %p334 = pneg %p57
      %s335 = smul.u32 %s23, 8
      %s336 = ssub.s32 %s335, 1
      %p337 = scmp.gt.s32.totalorder %s336, 0
      %s338 = scalar_select %p337, %s336, 0
      %p339 = scmp.lt.s32.totalorder %s21, 1
      %s340 = scalar_select %p339, %s21, 1
      %p341 = scmp.lt.s32.totalorder %s338, 15
      %s342 = scalar_select %p341, %s338, 15
      %p343 = scmp.lt.s32.totalorder %s22, 0
      %s344 = scalar_select %p343, %s22, 0
      %s345 = smul.addr %s342, 2
      %s346 = sadd.s32 %s344, %s345
      %s347 = smul.addr %s340, 32
      %s348 = sadd.s32 %s346, %s347
      %s349 = smul.addr %s348, 8
      %s350 = scalar_lea.vmem %s1, %s349
      %p351 = pneg %p98
      %p352 = pneg %p95
      %s353 = smul.u32 %s23, 8
      %s354 = sadd.s32 %s353, 8
      %p355 = scmp.lt.s32.totalorder %s354, 15
      %s356 = scalar_select %p355, %s354, 15
      %p357 = scmp.lt.s32.totalorder %s21, 1
      %s358 = scalar_select %p357, %s21, 1
      %p359 = scmp.lt.s32.totalorder %s356, 15
      %s360 = scalar_select %p359, %s356, 15
      %p361 = scmp.lt.s32.totalorder %s22, 0
      %s362 = scalar_select %p361, %s22, 0
      %s363 = smul.addr %s360, 2
      %s364 = sadd.s32 %s362, %s363
      %s365 = smul.addr %s358, 32
      %s366 = sadd.s32 %s364, %s365
      %s367 = smul.addr %s366, 8
      %s368 = scalar_lea.vmem %s2, %s367
      %p369 = pneg %p136
      %p370 = pneg %p133
      %p371 = scmp.lt.s32.totalorder %s22, 0
      %s372 = scalar_select %p371, %s22, 0
      %s373 = smul.addr %s372, 4
      %s374 = scalar_lea.vmem %s3, %s373
      %p375 = pneg %p162
      %p376 = pneg %p159
      %p377 = scmp.lt.s32.totalorder %s22, 0
      %s378 = scalar_select %p377, %s22, 0
      %s379 = scalar_lea.vmem %s4, %s378
      %p380 = pneg %p188
      %p381 = pneg %p185
      %p382 = pneg %p218
      %p383 = pneg %p215
      %s384 = smul.u32 8, %s23
      %p385 = scmp.lt.s32.totalorder %s21, 1
      %s386 = scalar_select %p385, %s21, 1
      %p387 = scmp.lt.s32.totalorder %s384, 15
      %s388 = scalar_select %p387, %s384, 15
      %p389 = scmp.lt.s32.totalorder %s22, 0
      %s390 = scalar_select %p389, %s22, 0
      %s391 = smul.addr %s388, 2
      %s392 = sadd.s32 %s390, %s391
      %s393 = smul.addr %s386, 32
      %s394 = sadd.s32 %s392, %s393
      %s395 = smul.addr %s394, 8
      %s396 = scalar_lea.vmem %s5, %s395
      %s397 = smul.u32 8, %s23
      %p398 = scmp.lt.s32.totalorder %s21, 1
      %s399 = scalar_select %p398, %s21, 1
      %p400 = scmp.lt.s32.totalorder %s397, 15
      %s401 = scalar_select %p400, %s397, 15
      %p402 = scmp.lt.s32.totalorder %s22, 0
      %s403 = scalar_select %p402, %s22, 0
      %s404 = smul.addr %s401, 2
      %s405 = sadd.s32 %s403, %s404
      %s406 = smul.addr %s399, 32
      %s407 = sadd.s32 %s405, %s406
      %s408 = smul.addr %s407, 8
      %s409 = scalar_lea.vmem %s0, %s408
      %s410 = smul.u32 8, %s23
      %s411 = smul.u32 %s23, 8
      %s412 = ssub.s32 %s411, 1
      %p413 = scmp.gt.s32.totalorder %s412, 0
      %s414 = scalar_select %p413, %s412, 0
      %p415 = scmp.lt.s32.totalorder %s21, 1
      %s416 = scalar_select %p415, %s21, 1
      %p417 = scmp.lt.s32.totalorder %s414, 15
      %s418 = scalar_select %p417, %s414, 15
      %p419 = scmp.lt.s32.totalorder %s22, 0
      %s420 = scalar_select %p419, %s22, 0
      %s421 = smul.addr %s418, 2
      %s422 = sadd.s32 %s420, %s421
      %s423 = smul.addr %s416, 32
      %s424 = sadd.s32 %s422, %s423
      %s425 = smul.addr %s424, 8
      %s426 = scalar_lea.vmem %s1, %s425
      %s427 = smul.u32 %s23, 8
      %s428 = ssub.s32 %s427, 1
      %p429 = scmp.gt.s32.totalorder %s428, 0
      %s430 = scalar_select %p429, %s428, 0
      %s431 = smul.u32 %s23, 8
      %s432 = sadd.s32 %s431, 8
      %p433 = scmp.lt.s32.totalorder %s432, 15
      %s434 = scalar_select %p433, %s432, 15
      %p435 = scmp.lt.s32.totalorder %s21, 1
      %s436 = scalar_select %p435, %s21, 1
      %p437 = scmp.lt.s32.totalorder %s434, 15
      %s438 = scalar_select %p437, %s434, 15
      %p439 = scmp.lt.s32.totalorder %s22, 0
      %s440 = scalar_select %p439, %s22, 0
      %s441 = smul.addr %s438, 2
      %s442 = sadd.s32 %s440, %s441
      %s443 = smul.addr %s436, 32
      %s444 = sadd.s32 %s442, %s443
      %s445 = smul.addr %s444, 8
      %s446 = scalar_lea.vmem %s2, %s445
      %s447 = smul.u32 %s23, 8
      %s448 = sadd.s32 %s447, 8
      %p449 = scmp.lt.s32.totalorder %s448, 15
      %s450 = scalar_select %p449, %s448, 15
      %p451 = scmp.lt.s32.totalorder %s22, 0
      %s452 = scalar_select %p451, %s22, 0
      %s453 = smul.addr %s452, 4
      %s454 = scalar_lea.vmem %s3, %s453
      %p455 = scmp.lt.s32.totalorder %s22, 0
      %s456 = scalar_select %p455, %s22, 0
      %s457 = scalar_lea.vmem %s4, %s456
      %s458 = smul.u32 8, %s23
      %p459 = scmp.lt.s32.totalorder %s21, 1
      %s460 = scalar_select %p459, %s21, 1
      %p461 = scmp.lt.s32.totalorder %s458, 15
      %s462 = scalar_select %p461, %s458, 15
      %p463 = scmp.lt.s32.totalorder %s22, 0
      %s464 = scalar_select %p463, %s22, 0
      %s465 = smul.addr %s462, 2
      %s466 = sadd.s32 %s464, %s465
      %s467 = smul.addr %s460, 32
      %s468 = sadd.s32 %s466, %s467
      %s469 = smul.addr %s468, 8
      %s470 = scalar_lea.vmem %s5, %s469
      %s471 = smul.u32 8, %s23
      %v472 = vld [vmem:[%s409] sm:$0xff]
      %v473 = vld [vmem:[%s409 + $0x8] sm:$0xff]
      %v474 = vld [vmem:[%s409 + $0x10] sm:$0xff]
      %v475 = vld [vmem:[%s409 + $0x18] sm:$0xff]
      %v476 = vld [vmem:[%s409 + $0x20] sm:$0xff]
      %v477 = vld [vmem:[%s409 + $0x28] sm:$0xff]
      %v478 = vld [vmem:[%s409 + $0x30] sm:$0xff]
      %v479 = vld [vmem:[%s409 + $0x38] sm:$0xff]
      %v480 = vld [vmem:[%s409 + $0x40] sm:$0xff]
      %v481 = vld [vmem:[%s409 + $0x48] sm:$0xff]
      %v482 = vld [vmem:[%s409 + $0x50] sm:$0xff]
      %v483 = vld [vmem:[%s409 + $0x58] sm:$0xff]
      %v484 = vld [vmem:[%s409 + $0x60] sm:$0xff]
      %v485 = vld [vmem:[%s409 + $0x68] sm:$0xff]
      %v486 = vld [vmem:[%s409 + $0x70] sm:$0xff]
      %v487 = vld [vmem:[%s409 + $0x78] sm:$0xff]
      %v488 = vld [vmem:[%s426] sm:$0xff]
      %v489 = vld [vmem:[%s426 + $0x8] sm:$0xff]
      %p490 = scmp.gt.s32.totalorder %s23, 0
      %s491 = scalar_select %p490, 1, 0
      %s492 = scvt.s32.f32 %s491
      %v493 = vstv %s492
      %v494 = vmul.f32 %v488, %v493
      %v495 = vmul.f32 %v489, %v493
      %v496 = vld [vmem:[%s446] sm:$0xff]
      %v497 = vld [vmem:[%s446 + $0x8] sm:$0xff]
      %p498 = scmp.lt.s32.totalorder %s23, 1
      %s499 = scalar_select %p498, 1, 0
      %s500 = scvt.s32.f32 %s499
      %v501 = vstv %s500
      %v502 = vmul.f32 %v496, %v501
      %v503 = vmul.f32 %v497, %v501
      %v504 = vld [vmem:[%s454] sm:$0x7]
      %v505 = vld [vmem:[%s454 + $0x4] sm:$0x7]
      %v506 = vld [vmem:[%s454 + $0x8] sm:$0x7]
      %v507 = vld [vmem:[%s457] sm:$0x1]
      %v508 = vlaneseq
      %v509 = vshrl.u32 %v508, 7
      %v510 = vsub.s32 0, %v509
      %v511 = vrot.slane %v504, %v510
      %v512 = vmul.f32 %v511, %v494
      %v513 = vmul.f32 %v511, %v495
      %v514 = vmul.f32 %v511, %v472
      %v515 = vmul.f32 %v511, %v473
      %v516 = vmul.f32 %v511, %v474
      %v517 = vmul.f32 %v511, %v475
      %v518 = vmul.f32 %v511, %v476
      %v519 = vmul.f32 %v511, %v477
      %v520 = vmul.f32 %v511, %v478
      %v521 = vmul.f32 %v511, %v479
      %v522 = vmul.f32 %v511, %v480
      %v523 = vmul.f32 %v511, %v481
      %v524 = vmul.f32 %v511, %v482
      %v525 = vmul.f32 %v511, %v483
      %v526 = vmul.f32 %v511, %v484
      %v527 = vmul.f32 %v511, %v485
      %v528 = vlaneseq
      %v529 = vshrl.u32 %v528, 7
      %v530 = vsub.s32 0, %v529
      %v531 = vrot.slane %v505, %v530
      %v532 = vmul.f32 %v531, %v472
      %v533 = vmul.f32 %v531, %v473
      %v534 = vmul.f32 %v531, %v474
      %v535 = vmul.f32 %v531, %v475
      %v536 = vmul.f32 %v531, %v476
      %v537 = vmul.f32 %v531, %v477
      %v538 = vmul.f32 %v531, %v478
      %v539 = vmul.f32 %v531, %v479
      %v540 = vmul.f32 %v531, %v480
      %v541 = vmul.f32 %v531, %v481
      %v542 = vmul.f32 %v531, %v482
      %v543 = vmul.f32 %v531, %v483
      %v544 = vmul.f32 %v531, %v484
      %v545 = vmul.f32 %v531, %v485
      %v546 = vmul.f32 %v531, %v486
      %v547 = vmul.f32 %v531, %v487
      %v548 = vadd.f32 %v512, %v532
      %v549 = vadd.f32 %v513, %v533
      %v550 = vadd.f32 %v514, %v534
      %v551 = vadd.f32 %v515, %v535
      %v552 = vadd.f32 %v516, %v536
      %v553 = vadd.f32 %v517, %v537
      %v554 = vadd.f32 %v518, %v538
      %v555 = vadd.f32 %v519, %v539
      %v556 = vadd.f32 %v520, %v540
      %v557 = vadd.f32 %v521, %v541
      %v558 = vadd.f32 %v522, %v542
      %v559 = vadd.f32 %v523, %v543
      %v560 = vadd.f32 %v524, %v544
      %v561 = vadd.f32 %v525, %v545
      %v562 = vadd.f32 %v526, %v546
      %v563 = vadd.f32 %v527, %v547
      %v564 = vlaneseq
      %v565 = vshrl.u32 %v564, 7
      %v566 = vsub.s32 0, %v565
      %v567 = vrot.slane %v506, %v566
      %v568 = vmul.f32 %v567, %v474
      %v569 = vmul.f32 %v567, %v475
      %v570 = vmul.f32 %v567, %v476
      %v571 = vmul.f32 %v567, %v477
      %v572 = vmul.f32 %v567, %v478
      %v573 = vmul.f32 %v567, %v479
      %v574 = vmul.f32 %v567, %v480
      %v575 = vmul.f32 %v567, %v481
      %v576 = vmul.f32 %v567, %v482
      %v577 = vmul.f32 %v567, %v483
      %v578 = vmul.f32 %v567, %v484
      %v579 = vmul.f32 %v567, %v485
      %v580 = vmul.f32 %v567, %v486
      %v581 = vmul.f32 %v567, %v487
      %v582 = vmul.f32 %v567, %v502
      %v583 = vmul.f32 %v567, %v503
      %v584 = vadd.f32 %v548, %v568
      %v585 = vadd.f32 %v549, %v569
      %v586 = vadd.f32 %v550, %v570
      %v587 = vadd.f32 %v551, %v571
      %v588 = vadd.f32 %v552, %v572
      %v589 = vadd.f32 %v553, %v573
      %v590 = vadd.f32 %v554, %v574
      %v591 = vadd.f32 %v555, %v575
      %v592 = vadd.f32 %v556, %v576
      %v593 = vadd.f32 %v557, %v577
      %v594 = vadd.f32 %v558, %v578
      %v595 = vadd.f32 %v559, %v579
      %v596 = vadd.f32 %v560, %v580
      %v597 = vadd.f32 %v561, %v581
      %v598 = vadd.f32 %v562, %v582
      %v599 = vadd.f32 %v563, %v583
      %v600 = vlaneseq
      %v601 = vshrl.u32 %v600, 7
      %v602 = vsub.s32 1, %v601
      %v603 = vrot.slane %v504, %v602
      %v604 = vmul.f32 %v603, %v494
      %v605 = vmul.f32 %v603, %v495
      %v606 = vmul.f32 %v603, %v472
      %v607 = vmul.f32 %v603, %v473
      %v608 = vmul.f32 %v603, %v474
      %v609 = vmul.f32 %v603, %v475
      %v610 = vmul.f32 %v603, %v476
      %v611 = vmul.f32 %v603, %v477
      %v612 = vmul.f32 %v603, %v478
      %v613 = vmul.f32 %v603, %v479
      %v614 = vmul.f32 %v603, %v480
      %v615 = vmul.f32 %v603, %v481
      %v616 = vmul.f32 %v603, %v482
      %v617 = vmul.f32 %v603, %v483
      %v618 = vmul.f32 %v603, %v484
      %v619 = vmul.f32 %v603, %v485
      %v620 = vlaneseq
      %v621 = vshrl.u32 %v620, 7
      %v622 = vsub.s32 1, %v621
      %v623 = vrot.slane %v505, %v622
      %v624 = vmul.f32 %v623, %v472
      %v625 = vmul.f32 %v623, %v473
      %v626 = vmul.f32 %v623, %v474
      %v627 = vmul.f32 %v623, %v475
      %v628 = vmul.f32 %v623, %v476
      %v629 = vmul.f32 %v623, %v477
      %v630 = vmul.f32 %v623, %v478
      %v631 = vmul.f32 %v623, %v479
      %v632 = vmul.f32 %v623, %v480
      %v633 = vmul.f32 %v623, %v481
      %v634 = vmul.f32 %v623, %v482
      %v635 = vmul.f32 %v623, %v483
      %v636 = vmul.f32 %v623, %v484
      %v637 = vmul.f32 %v623, %v485
      %v638 = vmul.f32 %v623, %v486
      %v639 = vmul.f32 %v623, %v487
      %v640 = vadd.f32 %v604, %v624
      %v641 = vadd.f32 %v605, %v625
      %v642 = vadd.f32 %v606, %v626
      %v643 = vadd.f32 %v607, %v627
      %v644 = vadd.f32 %v608, %v628
      %v645 = vadd.f32 %v609, %v629
      %v646 = vadd.f32 %v610, %v630
      %v647 = vadd.f32 %v611, %v631
      %v648 = vadd.f32 %v612, %v632
      %v649 = vadd.f32 %v613, %v633
      %v650 = vadd.f32 %v614, %v634
      %v651 = vadd.f32 %v615, %v635
      %v652 = vadd.f32 %v616, %v636
      %v653 = vadd.f32 %v617, %v637
      %v654 = vadd.f32 %v618, %v638
      %v655 = vadd.f32 %v619, %v639
      %v656 = vlaneseq
      %v657 = vshrl.u32 %v656, 7
      %v658 = vsub.s32 1, %v657
      %v659 = vrot.slane %v506, %v658
      %v660 = vmul.f32 %v659, %v474
      %v661 = vmul.f32 %v659, %v475
      %v662 = vmul.f32 %v659, %v476
      %v663 = vmul.f32 %v659, %v477
      %v664 = vmul.f32 %v659, %v478
      %v665 = vmul.f32 %v659, %v479
      %v666 = vmul.f32 %v659, %v480
      %v667 = vmul.f32 %v659, %v481
      %v668 = vmul.f32 %v659, %v482
      %v669 = vmul.f32 %v659, %v483
      %v670 = vmul.f32 %v659, %v484
      %v671 = vmul.f32 %v659, %v485
      %v672 = vmul.f32 %v659, %v486
      %v673 = vmul.f32 %v659, %v487
      %v674 = vmul.f32 %v659, %v502
      %v675 = vmul.f32 %v659, %v503
      %v676 = vadd.f32 %v640, %v660
      %v677 = vadd.f32 %v641, %v661
      %v678 = vadd.f32 %v642, %v662
      %v679 = vadd.f32 %v643, %v663
      %v680 = vadd.f32 %v644, %v664
      %v681 = vadd.f32 %v645, %v665
      %v682 = vadd.f32 %v646, %v666
      %v683 = vadd.f32 %v647, %v667
      %v684 = vadd.f32 %v648, %v668
      %v685 = vadd.f32 %v649, %v669
      %v686 = vadd.f32 %v650, %v670
      %v687 = vadd.f32 %v651, %v671
      %v688 = vadd.f32 %v652, %v672
      %v689 = vadd.f32 %v653, %v673
      %v690 = vadd.f32 %v654, %v674
      %v691 = vadd.f32 %v655, %v675
      %v692 = vlaneseq
      %v693 = vshrl.u32 %v692, 7
      %v694 = vsub.s32 2, %v693
      %v695 = vrot.slane %v504, %v694
      %v696 = vmul.f32 %v695, %v494
      %v697 = vmul.f32 %v695, %v495
      %v698 = vmul.f32 %v695, %v472
      %v699 = vmul.f32 %v695, %v473
      %v700 = vmul.f32 %v695, %v474
      %v701 = vmul.f32 %v695, %v475
      %v702 = vmul.f32 %v695, %v476
      %v703 = vmul.f32 %v695, %v477
      %v704 = vmul.f32 %v695, %v478
      %v705 = vmul.f32 %v695, %v479
      %v706 = vmul.f32 %v695, %v480
      %v707 = vmul.f32 %v695, %v481
      %v708 = vmul.f32 %v695, %v482
      %v709 = vmul.f32 %v695, %v483
      %v710 = vmul.f32 %v695, %v484
      %v711 = vmul.f32 %v695, %v485
      %v712 = vlaneseq
      %v713 = vshrl.u32 %v712, 7
      %v714 = vsub.s32 2, %v713
      %v715 = vrot.slane %v505, %v714
      %v716 = vmul.f32 %v715, %v472
      %v717 = vmul.f32 %v715, %v473
      %v718 = vmul.f32 %v715, %v474
      %v719 = vmul.f32 %v715, %v475
      %v720 = vmul.f32 %v715, %v476
      %v721 = vmul.f32 %v715, %v477
      %v722 = vmul.f32 %v715, %v478
      %v723 = vmul.f32 %v715, %v479
      %v724 = vmul.f32 %v715, %v480
      %v725 = vmul.f32 %v715, %v481
      %v726 = vmul.f32 %v715, %v482
      %v727 = vmul.f32 %v715, %v483
      %v728 = vmul.f32 %v715, %v484
      %v729 = vmul.f32 %v715, %v485
      %v730 = vmul.f32 %v715, %v486
      %v731 = vmul.f32 %v715, %v487
      %v732 = vadd.f32 %v696, %v716
      %v733 = vadd.f32 %v697, %v717
      %v734 = vadd.f32 %v698, %v718
      %v735 = vadd.f32 %v699, %v719
      %v736 = vadd.f32 %v700, %v720
      %v737 = vadd.f32 %v701, %v721
      %v738 = vadd.f32 %v702, %v722
      %v739 = vadd.f32 %v703, %v723
      %v740 = vadd.f32 %v704, %v724
      %v741 = vadd.f32 %v705, %v725
      %v742 = vadd.f32 %v706, %v726
      %v743 = vadd.f32 %v707, %v727
      %v744 = vadd.f32 %v708, %v728
      %v745 = vadd.f32 %v709, %v729
      %v746 = vadd.f32 %v710, %v730
      %v747 = vadd.f32 %v711, %v731
      %v748 = vlaneseq
      %v749 = vshrl.u32 %v748, 7
      %v750 = vsub.s32 2, %v749
      %v751 = vrot.slane %v506, %v750
      %v752 = vmul.f32 %v751, %v474
      %v753 = vmul.f32 %v751, %v475
      %v754 = vmul.f32 %v751, %v476
      %v755 = vmul.f32 %v751, %v477
      %v756 = vmul.f32 %v751, %v478
      %v757 = vmul.f32 %v751, %v479
      %v758 = vmul.f32 %v751, %v480
      %v759 = vmul.f32 %v751, %v481
      %v760 = vmul.f32 %v751, %v482
      %v761 = vmul.f32 %v751, %v483
      %v762 = vmul.f32 %v751, %v484
      %v763 = vmul.f32 %v751, %v485
      %v764 = vmul.f32 %v751, %v486
      %v765 = vmul.f32 %v751, %v487
      %v766 = vmul.f32 %v751, %v502
      %v767 = vmul.f32 %v751, %v503
      %v768 = vadd.f32 %v732, %v752
      %v769 = vadd.f32 %v733, %v753
      %v770 = vadd.f32 %v734, %v754
      %v771 = vadd.f32 %v735, %v755
      %v772 = vadd.f32 %v736, %v756
      %v773 = vadd.f32 %v737, %v757
      %v774 = vadd.f32 %v738, %v758
      %v775 = vadd.f32 %v739, %v759
      %v776 = vadd.f32 %v740, %v760
      %v777 = vadd.f32 %v741, %v761
      %v778 = vadd.f32 %v742, %v762
      %v779 = vadd.f32 %v743, %v763
      %v780 = vadd.f32 %v744, %v764
      %v781 = vadd.f32 %v745, %v765
      %v782 = vadd.f32 %v746, %v766
      %v783 = vadd.f32 %v747, %v767
      %v784 = vlaneseq
      %v785 = vshrl.u32 %v784, 7
      %v786 = vadd.s32 %v785, 8
      %vm787 = vcmp.ne.s32.totalorder %v785, 0
      %vm788 = vcmp.ne.s32.totalorder %v786, 0
      %v789 = vsel %vm787, 1, 0
      %v790 = vsel %vm788, 1, 0
      %v791 = vcvt.s32.f32 %v789
      %v792 = vcvt.s32.f32 %v790
      %vm793 = vcmp.ne.s32.totalorder %v785, 15
      %vm794 = vcmp.ne.s32.totalorder %v786, 15
      %v795 = vsel %vm793, 1, 0
      %v796 = vsel %vm794, 1, 0
      %v797 = vcvt.s32.f32 %v795
      %v798 = vcvt.s32.f32 %v796
      %v799 = vrot.slane %v584, 7
      %v800 = vrot.slane %v586, 7
      %v801 = vrot.slane %v588, 7
      %v802 = vrot.slane %v590, 7
      %v803 = vrot.slane %v592, 7
      %v804 = vrot.slane %v594, 7
      %v805 = vrot.slane %v596, 7
      %v806 = vrot.slane %v598, 7
      %v807 = vrot.slane %v585, 7
      %v808 = vrot.slane %v587, 7
      %v809 = vrot.slane %v589, 7
      %v810 = vrot.slane %v591, 7
      %v811 = vrot.slane %v593, 7
      %v812 = vrot.slane %v595, 7
      %v813 = vrot.slane %v597, 7
      %v814 = vrot.slane %v599, 7
      %vm815 = vcmp.lt.s32.totalorder %v785, 1
      %v816 = vsel %vm815, %v799, %v807
      %v817 = vsel %vm815, %v800, %v808
      %v818 = vsel %vm815, %v801, %v809
      %v819 = vsel %vm815, %v802, %v810
      %v820 = vsel %vm815, %v803, %v811
      %v821 = vsel %vm815, %v804, %v812
      %v822 = vsel %vm815, %v805, %v813
      %v823 = vsel %vm815, %v806, %v814
      %v824 = vsel %vm815, %v807, %v799
      %v825 = vsel %vm815, %v808, %v800
      %v826 = vsel %vm815, %v809, %v801
      %v827 = vsel %vm815, %v810, %v802
      %v828 = vsel %vm815, %v811, %v803
      %v829 = vsel %vm815, %v812, %v804
      %v830 = vsel %vm815, %v813, %v805
      %v831 = vsel %vm815, %v814, %v806
      %v832 = vmul.f32 %v791, %v824
      %v833 = vmul.f32 %v792, %v816
      %v834 = vmul.f32 %v791, %v825
      %v835 = vmul.f32 %v792, %v817
      %v836 = vmul.f32 %v791, %v826
      %v837 = vmul.f32 %v792, %v818
      %v838 = vmul.f32 %v791, %v827
      %v839 = vmul.f32 %v792, %v819
      %v840 = vmul.f32 %v791, %v828
      %v841 = vmul.f32 %v792, %v820
      %v842 = vmul.f32 %v791, %v829
      %v843 = vmul.f32 %v792, %v821
      %v844 = vmul.f32 %v791, %v830
      %v845 = vmul.f32 %v792, %v822
      %v846 = vmul.f32 %v791, %v831
      %v847 = vmul.f32 %v792, %v823
      %v848 = vadd.f32 %v832, %v676
      %v849 = vadd.f32 %v833, %v677
      %v850 = vadd.f32 %v834, %v678
      %v851 = vadd.f32 %v835, %v679
      %v852 = vadd.f32 %v836, %v680
      %v853 = vadd.f32 %v837, %v681
      %v854 = vadd.f32 %v838, %v682
      %v855 = vadd.f32 %v839, %v683
      %v856 = vadd.f32 %v840, %v684
      %v857 = vadd.f32 %v841, %v685
      %v858 = vadd.f32 %v842, %v686
      %v859 = vadd.f32 %v843, %v687
      %v860 = vadd.f32 %v844, %v688
      %v861 = vadd.f32 %v845, %v689
      %v862 = vadd.f32 %v846, %v690
      %v863 = vadd.f32 %v847, %v691
      %v864 = vrot.slane %v768, 1
      %v865 = vrot.slane %v770, 1
      %v866 = vrot.slane %v772, 1
      %v867 = vrot.slane %v774, 1
      %v868 = vrot.slane %v776, 1
      %v869 = vrot.slane %v778, 1
      %v870 = vrot.slane %v780, 1
      %v871 = vrot.slane %v782, 1
      %v872 = vrot.slane %v769, 1
      %v873 = vrot.slane %v771, 1
      %v874 = vrot.slane %v773, 1
      %v875 = vrot.slane %v775, 1
      %v876 = vrot.slane %v777, 1
      %v877 = vrot.slane %v779, 1
      %v878 = vrot.slane %v781, 1
      %v879 = vrot.slane %v783, 1
      %vm880 = vcmp.lt.s32.totalorder %v785, 7
      %v881 = vsel %vm880, %v864, %v872
      %v882 = vsel %vm880, %v865, %v873
      %v883 = vsel %vm880, %v866, %v874
      %v884 = vsel %vm880, %v867, %v875
      %v885 = vsel %vm880, %v868, %v876
      %v886 = vsel %vm880, %v869, %v877
      %v887 = vsel %vm880, %v870, %v878
      %v888 = vsel %vm880, %v871, %v879
      %v889 = vsel %vm880, %v872, %v864
      %v890 = vsel %vm880, %v873, %v865
      %v891 = vsel %vm880, %v874, %v866
      %v892 = vsel %vm880, %v875, %v867
      %v893 = vsel %vm880, %v876, %v868
      %v894 = vsel %vm880, %v877, %v869
      %v895 = vsel %vm880, %v878, %v870
      %v896 = vsel %vm880, %v879, %v871
      %v897 = vmul.f32 %v797, %v881
      %v898 = vmul.f32 %v798, %v889
      %v899 = vmul.f32 %v797, %v882
      %v900 = vmul.f32 %v798, %v890
      %v901 = vmul.f32 %v797, %v883
      %v902 = vmul.f32 %v798, %v891
      %v903 = vmul.f32 %v797, %v884
      %v904 = vmul.f32 %v798, %v892
      %v905 = vmul.f32 %v797, %v885
      %v906 = vmul.f32 %v798, %v893
      %v907 = vmul.f32 %v797, %v886
      %v908 = vmul.f32 %v798, %v894
      %v909 = vmul.f32 %v797, %v887
      %v910 = vmul.f32 %v798, %v895
      %v911 = vmul.f32 %v797, %v888
      %v912 = vmul.f32 %v798, %v896
      %v913 = vadd.f32 %v848, %v897
      %v914 = vadd.f32 %v849, %v898
      %v915 = vadd.f32 %v850, %v899
      %v916 = vadd.f32 %v851, %v900
      %v917 = vadd.f32 %v852, %v901
      %v918 = vadd.f32 %v853, %v902
      %v919 = vadd.f32 %v854, %v903
      %v920 = vadd.f32 %v855, %v904
      %v921 = vadd.f32 %v856, %v905
      %v922 = vadd.f32 %v857, %v906
      %v923 = vadd.f32 %v858, %v907
      %v924 = vadd.f32 %v859, %v908
      %v925 = vadd.f32 %v860, %v909
      %v926 = vadd.f32 %v861, %v910
      %v927 = vadd.f32 %v862, %v911
      %v928 = vadd.f32 %v863, %v912
      %v930 = vlaneseq
      %v931 = vshrl.u32 %v930, 7
      %v932 = vsub.s32 0, %v931
      %v933 = vrot.slane %v507, %v932
      %v935 = vadd.f32 %v913, %v933
      %v936 = vadd.f32 %v914, %v933
      %v937 = vadd.f32 %v915, %v933
      %v938 = vadd.f32 %v916, %v933
      %v939 = vadd.f32 %v917, %v933
      %v940 = vadd.f32 %v918, %v933
      %v941 = vadd.f32 %v919, %v933
      %v942 = vadd.f32 %v920, %v933
      %v943 = vadd.f32 %v921, %v933
      %v944 = vadd.f32 %v922, %v933
      %v945 = vadd.f32 %v923, %v933
      %v946 = vadd.f32 %v924, %v933
      %v947 = vadd.f32 %v925, %v933
      %v948 = vadd.f32 %v926, %v933
      %v949 = vadd.f32 %v927, %v933
      %v950 = vadd.f32 %v928, %v933
      %vm951 = vcmask 31744
      %952 = vst.msk [vmem:[%s470] sm:$0xff] %vm951, %v935
      %953 = vst.msk [vmem:[%s470 + $0x8] sm:$0xff] %vm951, %v936
      %954 = vst.msk [vmem:[%s470 + $0x10] sm:$0xff] %vm951, %v937
      %955 = vst.msk [vmem:[%s470 + $0x18] sm:$0xff] %vm951, %v938
      %956 = vst.msk [vmem:[%s470 + $0x20] sm:$0xff] %vm951, %v939
      %957 = vst.msk [vmem:[%s470 + $0x28] sm:$0xff] %vm951, %v940
      %958 = vst.msk [vmem:[%s470 + $0x30] sm:$0xff] %vm951, %v941
      %959 = vst.msk [vmem:[%s470 + $0x38] sm:$0xff] %vm951, %v942
      %960 = vst.msk [vmem:[%s470 + $0x40] sm:$0xff] %vm951, %v943
      %961 = vst.msk [vmem:[%s470 + $0x48] sm:$0xff] %vm951, %v944
      %962 = vst.msk [vmem:[%s470 + $0x50] sm:$0xff] %vm951, %v945
      %963 = vst.msk [vmem:[%s470 + $0x58] sm:$0xff] %vm951, %v946
      %964 = vst.msk [vmem:[%s470 + $0x60] sm:$0xff] %vm951, %v947
      %965 = vst.msk [vmem:[%s470 + $0x68] sm:$0xff] %vm951, %v948
      %966 = vst.msk [vmem:[%s470 + $0x70] sm:$0xff] %vm951, %v949
      %967 = vst.msk [vmem:[%s470 + $0x78] sm:$0xff] %vm951, %v950
      %s968 = smul.u32 8, %s23
      %p969 = scmp.lt.s32.totalorder %s21, 1
      %s970 = scalar_select %p969, %s21, 1
      %p971 = scmp.lt.s32.totalorder %s968, 15
      %s972 = scalar_select %p971, %s968, 15
      %p973 = scmp.lt.s32.totalorder %s22, 0
      %s974 = scalar_select %p973, %s22, 0
      %s975 = smul.addr %s972, 2
      %s976 = sadd.s32 %s974, %s975
      %s977 = smul.addr %s970, 32
      %s978 = sadd.s32 %s976, %s977
      %s979 = smul.addr %s978, 8
      %s980 = scalar_lea.vmem %s5, %s979
      // Predicated region
      $region41: #{tpu_custom_call.1} parent=39 // pred_check
        %p981 = pneg %p215
      $region42: #{tpu_custom_call.1} parent=39 // pred_check_branch
        %983 = sbr.rel (%p981) target = $region44
      $region43: #{tpu_custom_call.1} parent=39 // pred_region
        %s984 = smul.u32 8, %s23
      $region44: #{tpu_custom_call.1} parent=39 // pred_fallthru
        _
    $region40: #{tpu_custom_call.1} parent=5 // pred_fallthru
      _
    %p985 = scmp.le.s32.totalorder 2, %s11
    // Predicated region
    $region45: #{tpu_custom_call.1} parent=5 // pred_check
      %p986 = pneg %p985
    $region46: #{tpu_custom_call.1} parent=5 // pred_check_branch
      %988 = sbr.rel (%p986) target = $region48
    $region47: #{tpu_custom_call.1} parent=5 // pred_region
      %s989 = ssub.s32 %s11, 2
      // Predicated region
      $region49: #{tpu_custom_call.1} parent=47 // pred_check
        %p990 = pneg %p221
      $region50: #{tpu_custom_call.1} parent=47 // pred_check_branch
        %992 = sbr.rel (%p990) target = $region52
      $region51: #{tpu_custom_call.1} parent=47 // pred_region
        %s993 = smul.u32 8, %s26
        %p994 = scmp.lt.s32.totalorder %s24, 1
        %s995 = scalar_select %p994, %s24, 1
        %p996 = scmp.lt.s32.totalorder %s993, 15
        %s997 = scalar_select %p996, %s993, 15
        %p998 = scmp.lt.s32.totalorder %s25, 0
        %s999 = scalar_select %p998, %s25, 0
        %s1000 = smul.addr %s997, 2
        %s1001 = sadd.s32 %s999, %s1000
        %s1002 = smul.addr %s995, 32
        %s1003 = sadd.s32 %s1001, %s1002
        %s1004 = smul.addr %s1003, 8
        %s1005 = scalar_lea.vmem %s5, %s1004
      $region52: #{tpu_custom_call.1} parent=47 // pred_fallthru
        _
    $region48: #{tpu_custom_call.1} parent=5 // pred_fallthru
      _
  $region6: #{tpu_custom_call.1} parent=0 // loop_footer
    %s15 = sadd.s32 1, %s11
  $region7: #{tpu_custom_call.1} parent=0 // loop_footer_branch
    %10 = sbr.rel target = $region3
  $region8: #{tpu_custom_call.1} parent=0 // loop_exit
    _

</llo_original>
